<compile_context>
chip_gen: v7x
topology: tpu7x:2x2x1
jax: 0.10.0
libtpu: 0.0.40
codegen_flags: <defaults>
</compile_context>

<pallas_src>
import jax
import jax.numpy as jnp
from jax.experimental import pallas as pl
from jax.experimental.pallas import tpu as pltpu


# ---------------------------------------------------------------------------
# Pallas kernels
# ---------------------------------------------------------------------------

def message_kernel(src_ref, tgt_ref, dist_ref,
                   wm_src_ref, wm_tgt_ref, wm_dist_ref, bm_ref,
                   out_ref):
    """message_mlp(cat(src, tgt, dist)) for one tile of edges."""
    pre = (jnp.dot(src_ref[...], wm_src_ref[...],
                   preferred_element_type=jnp.float32)
           + jnp.dot(tgt_ref[...], wm_tgt_ref[...],
                     preferred_element_type=jnp.float32)
           + dist_ref[...] * wm_dist_ref[...]            # [tE,1] * [1,d_out]
           + bm_ref[...])
    out_ref[...] = jnp.maximum(pre, 0.0)                 # ReLU


def update_kernel(node_ref, aggr_ref,
                  wr_ref, wu_node_ref, wu_aggr_ref, bu_ref,
                  out_ref):
    """residual_proj(node) + node_update_mlp(cat(node, aggr)) for a node tile."""
    node = node_ref[...]
    upd = jnp.maximum(
        jnp.dot(node, wu_node_ref[...], preferred_element_type=jnp.float32)
        + jnp.dot(aggr_ref[...], wu_aggr_ref[...],
                  preferred_element_type=jnp.float32)
        + bu_ref[...],
        0.0)
    resid = jnp.dot(node, wr_ref[...], preferred_element_type=jnp.float32)
    out_ref[...] = resid + upd


def predict_kernel(pooled_ref, w1_ref, b1_ref, w2_ref, b2_ref, out_ref):
    """f_predict: Linear -> ReLU -> Linear on the per-graph pooled embeddings."""
    h = jnp.maximum(
        jnp.dot(pooled_ref[...], w1_ref[...],
                preferred_element_type=jnp.float32) + b1_ref[...],
        0.0)
    out_ref[...] = (jnp.dot(h, w2_ref[...], preferred_element_type=jnp.float32)
                    + b2_ref[...])


# ---------------------------------------------------------------------------
# Wrappers around pallas_call
# ---------------------------------------------------------------------------

_ROW_TILE = 1024       # rows per tile along E / N (multiple of 8, VMEM-friendly)


def _round_up(x, m):
    return ((x + m - 1) // m) * m


def _row_tile(n_rows):
    if n_rows >= _ROW_TILE:
        return _ROW_TILE
    return _round_up(max(n_rows, 8), 8)


def _pad_rows(a, rows):
    pad = rows - a.shape[0]
    if pad == 0:
        return a
    return jnp.pad(a, ((0, pad), (0, 0)))


def _full_spec(shape):
    # whole-array block, resident across every grid step
    return pl.BlockSpec(shape, lambda i: (0, 0))


def message_layer(src, tgt, dist, p):
    """msg = relu(Linear(cat(src, tgt, dist))), tiled over edges."""
    e, d_in = src.shape
    d_out = p["wm_src"].shape[1]
    te = _row_tile(e)
    e_pad = _round_up(e, te)
    src_p = _pad_rows(src, e_pad)
    tgt_p = _pad_rows(tgt, e_pad)
    dist_p = _pad_rows(dist, e_pad)

    out = pl.pallas_call(
        message_kernel,
        out_shape=jax.ShapeDtypeStruct((e_pad, d_out), jnp.float32),
        grid=(e_pad // te,),
        in_specs=[
            pl.BlockSpec((te, d_in), lambda i: (i, 0)),
            pl.BlockSpec((te, d_in), lambda i: (i, 0)),
            pl.BlockSpec((te, 1), lambda i: (i, 0)),
            _full_spec((d_in, d_out)),
            _full_spec((d_in, d_out)),
            _full_spec((1, d_out)),
            _full_spec((1, d_out)),
        ],
        out_specs=pl.BlockSpec((te, d_out), lambda i: (i, 0)),
        compiler_params=pltpu.CompilerParams(
            dimension_semantics=("parallel",)),
    )(src_p, tgt_p, dist_p, p["wm_src"], p["wm_tgt"], p["wm_dist"], p["bm"])
    return out[:e]


def update_layer(node, aggr, p):
    """new_node = residual_proj(node) + relu(Linear(cat(node, aggr)))."""
    n, d_in = node.shape
    d_out = p["wr"].shape[1]
    tn = _row_tile(n)
    n_pad = _round_up(n, tn)
    node_p = _pad_rows(node, n_pad)
    aggr_p = _pad_rows(aggr, n_pad)

    out = pl.pallas_call(
        update_kernel,
        out_shape=jax.ShapeDtypeStruct((n_pad, d_out), jnp.float32),
        grid=(n_pad // tn,),
        in_specs=[
            pl.BlockSpec((tn, d_in), lambda i: (i, 0)),
            pl.BlockSpec((tn, d_out), lambda i: (i, 0)),
            _full_spec((d_in, d_out)),
            _full_spec((d_in, d_out)),
            _full_spec((d_out, d_out)),
            _full_spec((1, d_out)),
        ],
        out_specs=pl.BlockSpec((tn, d_out), lambda i: (i, 0)),
        compiler_params=pltpu.CompilerParams(
            dimension_semantics=("parallel",)),
    )(node_p, aggr_p, p["wr"], p["wu_node"], p["wu_aggr"], p["bu"])
    return out[:n]


def predict(pooled, p):
    n_graphs = pooled.shape[0]
    target_size = p["w2"].shape[1]
    vmem = pl.BlockSpec(memory_space=pltpu.MemorySpace.VMEM)
    return pl.pallas_call(
        predict_kernel,
        out_shape=jax.ShapeDtypeStruct((n_graphs, target_size), jnp.float32),
        in_specs=[vmem] * 5,
        out_specs=vmem,
    )(pooled, p["w1"], p["b1"], p["w2"], p["b2"])


def equivariant_gnn_forward(x, edge_dist, edge_index, batch_index, params,
                            *, num_graphs):
    """Full EquivariantGNN.forward.  x: [N, hidden] float node features."""
    n_nodes = x.shape[0]
    row = edge_index[0]
    col = edge_index[1]

    node_embed = x
    for p in params["mp_layers"]:
        # real gathers (XLA) -- O(E*d), no one-hot matrices
        src = jnp.take(node_embed, row, axis=0)
        tgt = jnp.take(node_embed, col, axis=0)
        msg = message_layer(src, tgt, edge_dist, p)          # Pallas, grid over E
        # real scatter-sum (XLA segment sum) over `col`
        aggr = jax.ops.segment_sum(msg, col, num_segments=n_nodes)
        node_embed = update_layer(node_embed, aggr, p)        # Pallas, grid over N

    # SumAggregation over batch, then f_predict
    pooled = jax.ops.segment_sum(node_embed, batch_index, num_segments=num_graphs)
    return predict(pooled, params["predict"])


# ---------------------------------------------------------------------------
# Deterministic parameter init (shapes follow the nn.Module __init__)
# ---------------------------------------------------------------------------

def init_params(key, hidden_channels, final_embedding_size, target_size,
                num_mp_layers):
    channels = [hidden_channels] * num_mp_layers + [final_embedding_size]
    params = {"mp_layers": [], "predict": {}}

    def dense(k, shape, scale):
        return jax.random.normal(k, shape, dtype=jnp.float32) * scale

    for d_in, d_out in zip(channels[:-1], channels[1:]):
        key, *ks = jax.random.split(key, 8)
        s_msg = 1.0 / jnp.sqrt(2.0 * d_in + 1.0)
        s_upd = 1.0 / jnp.sqrt(float(d_in + d_out))
        s_res = 1.0 / jnp.sqrt(float(d_in))
        params["mp_layers"].append({
            # residual_proj: Linear(d_in, d_out, bias=False)
            "wr": dense(ks[0], (d_in, d_out), s_res),
            # message_mlp: Linear(2*d_in + 1, d_out)   (weight split: src|tgt|dist)
            "wm_src": dense(ks[1], (d_in, d_out), s_msg),
            "wm_tgt": dense(ks[2], (d_in, d_out), s_msg),
            "wm_dist": dense(ks[3], (1, d_out), s_msg),
            "bm": dense(ks[4], (1, d_out), s_msg),
            # node_update_mlp: Linear(d_in + d_out, d_out)  (weight split: node|aggr)
            "wu_node": dense(ks[5], (d_in, d_out), s_upd),
            "wu_aggr": dense(ks[6], (d_out, d_out), s_upd),
            "bu": dense(key, (1, d_out), s_upd),
        })

    key, k1, k2, k3, k4 = jax.random.split(key, 5)
    f = final_embedding_size
    s_f = 1.0 / jnp.sqrt(float(f))
    params["predict"] = {
        "w1": dense(k1, (f, f), s_f),
        "b1": dense(k2, (1, f), s_f),
        "w2": dense(k3, (f, target_size), s_f),
        "b2": dense(k4, (1, target_size), s_f),
    }
    return params


# ---------------------------------------------------------------------------
# Pure-JAX reference (correctness check for the kernels)
# ---------------------------------------------------------------------------

def reference_forward(x, edge_dist, edge_index, batch_index, params, num_graphs):
    row, col = edge_index[0], edge_index[1]
    node_embed = x
    n_nodes = x.shape[0]
    for p in params["mp_layers"]:
        src, tgt = node_embed[row], node_embed[col]
        msg = jax.nn.relu(src @ p["wm_src"] + tgt @ p["wm_tgt"]
                          + edge_dist * p["wm_dist"] + p["bm"])
        aggr = jnp.zeros((n_nodes, msg.shape[1]), jnp.float32).at[col].add(msg)
        upd = jax.nn.relu(node_embed @ p["wu_node"] + aggr @ p["wu_aggr"] + p["bu"])
        node_embed = node_embed @ p["wr"] + upd
    pooled = jnp.zeros((num_graphs, node_embed.shape[1]),
                       jnp.float32).at[batch_index].add(node_embed)
    pp = params["predict"]
    h = jax.nn.relu(pooled @ pp["w1"] + pp["b1"])
    return h @ pp["w2"] + pp["b2"]


# ---------------------------------------------------------------------------

if __name__ == "__main__":
    hidden_channels = 32
    final_embedding_size = 32      # default: == hidden_channels
    target_size = 1
    num_mp_layers = 2

    n_nodes = 16
    n_edges = 32
    num_graphs = 2

    key = jax.random.PRNGKey(0)
    kx, kd, ke, kp = jax.random.split(key, 4)

    # data.x used directly as node embeddings by encode(): float [N, hidden]
    x = jax.random.normal(kx, (n_nodes, hidden_channels), dtype=jnp.float32)
    # data.edge_attr: per-edge distance, [E, 1]
    edge_dist = jax.random.uniform(kd, (n_edges, 1), dtype=jnp.float32)
    # data.edge_index: [2, E] int32
    edge_index = jax.random.randint(ke, (2, n_edges), 0, n_nodes, dtype=jnp.int32)
    # data.batch: [N] graph assignment
    batch_index = jnp.concatenate([
        jnp.zeros((n_nodes // 2,), jnp.int32),
        jnp.ones((n_nodes - n_nodes // 2,), jnp.int32)])

    params = init_params(kp, hidden_channels, final_embedding_size,
                         target_size, num_mp_layers)

    # single jit: kernels + gather/segment-sum glue fuse together, index
    # preprocessing is not redone per pallas_call.
    forward = jax.jit(equivariant_gnn_forward, static_argnames=("num_graphs",))
    out = forward(x, edge_dist, edge_index, batch_index, params,
                  num_graphs=num_graphs)
    out = jax.block_until_ready(out)

    ref = reference_forward(x, edge_dist, edge_index, batch_index, params,
                            num_graphs)
    assert out.shape == (num_graphs, target_size)
    assert jnp.allclose(out, ref, atol=1e-3, rtol=1e-3), (out, ref)

    print("KERNEL_OK")
</pallas_src>

<mosaic_0001>
module attributes {stable_mosaic.version = 11 : i64} {
  func.func @message_kernel(%arg0: i32, %arg1: memref<32x32xf32, #tpu.memory_space<vmem>>, %arg2: memref<32x32xf32, #tpu.memory_space<vmem>>, %arg3: memref<32x1xf32, #tpu.memory_space<vmem>>, %arg4: memref<32x32xf32, #tpu.memory_space<vmem>>, %arg5: memref<32x32xf32, #tpu.memory_space<vmem>>, %arg6: memref<1x32xf32, #tpu.memory_space<vmem>>, %arg7: memref<1x32xf32, #tpu.memory_space<vmem>>, %arg8: memref<32x32xf32, #tpu.memory_space<vmem>>) attributes {dimension_semantics = [#tpu.dimension_semantics<parallel>], iteration_bounds = array<i64: 1>, scalar_prefetch = 0 : i64, scratch_operands = 0 : i64, tpu.core_type = #tpu.core_type<tc>, window_params = [{transform_indices = @transform_0, window_bounds = array<i64: 32, 32>}, {transform_indices = @transform_1, window_bounds = array<i64: 32, 32>}, {transform_indices = @transform_2, window_bounds = array<i64: 32, 1>}, {pipeline_mode = #tpu.pipeline_mode<synchronous>, transform_indices = @transform_3, window_bounds = array<i64: 32, 32>}, {pipeline_mode = #tpu.pipeline_mode<synchronous>, transform_indices = @transform_4, window_bounds = array<i64: 32, 32>}, {pipeline_mode = #tpu.pipeline_mode<synchronous>, transform_indices = @transform_5, window_bounds = array<i64: 1, 32>}, {pipeline_mode = #tpu.pipeline_mode<synchronous>, transform_indices = @transform_6, window_bounds = array<i64: 1, 32>}, {transform_indices = @transform_7, window_bounds = array<i64: 32, 32>}]} {
    %c0 = arith.constant 0 : index
    %c0_0 = arith.constant 0 : index
    %0 = vector.load %arg1[%c0, %c0_0] : memref<32x32xf32, #tpu.memory_space<vmem>>, vector<32x32xf32>
    %c0_1 = arith.constant 0 : index
    %c0_2 = arith.constant 0 : index
    %1 = vector.load %arg4[%c0_1, %c0_2] : memref<32x32xf32, #tpu.memory_space<vmem>>, vector<32x32xf32>
    %cst = arith.constant dense<0.000000e+00> : vector<32x32xf32>
    %2 = tpu.matmul %0, %1, %cst {dimension_numbers = #tpu.dot_dimension_numbers<[1], [0], [0], [1], [0, 0, 1, 1], [], []>} : vector<32x32xf32>, vector<32x32xf32>, vector<32x32xf32> -> vector<32x32xf32>
    %c0_3 = arith.constant 0 : index
    %c0_4 = arith.constant 0 : index
    %3 = vector.load %arg2[%c0_3, %c0_4] : memref<32x32xf32, #tpu.memory_space<vmem>>, vector<32x32xf32>
    %c0_5 = arith.constant 0 : index
    %c0_6 = arith.constant 0 : index
    %4 = vector.load %arg5[%c0_5, %c0_6] : memref<32x32xf32, #tpu.memory_space<vmem>>, vector<32x32xf32>
    %cst_7 = arith.constant dense<0.000000e+00> : vector<32x32xf32>
    %5 = tpu.matmul %3, %4, %cst_7 {dimension_numbers = #tpu.dot_dimension_numbers<[1], [0], [0], [1], [0, 0, 1, 1], [], []>} : vector<32x32xf32>, vector<32x32xf32>, vector<32x32xf32> -> vector<32x32xf32>
    %6 = arith.addf %2, %5 : vector<32x32xf32>
    %c0_8 = arith.constant 0 : index
    %c0_9 = arith.constant 0 : index
    %7 = vector.load %arg3[%c0_8, %c0_9] : memref<32x1xf32, #tpu.memory_space<vmem>>, vector<32x1xf32>
    %c0_10 = arith.constant 0 : index
    %c0_11 = arith.constant 0 : index
    %8 = vector.load %arg6[%c0_10, %c0_11] : memref<1x32xf32, #tpu.memory_space<vmem>>, vector<1x32xf32>
    %9 = vector.broadcast %7 : vector<32x1xf32> to vector<32x32xf32>
    %10 = vector.broadcast %8 : vector<1x32xf32> to vector<32x32xf32>
    %11 = arith.mulf %9, %10 : vector<32x32xf32>
    %12 = arith.addf %6, %11 : vector<32x32xf32>
    %c0_12 = arith.constant 0 : index
    %c0_13 = arith.constant 0 : index
    %13 = vector.load %arg7[%c0_12, %c0_13] : memref<1x32xf32, #tpu.memory_space<vmem>>, vector<1x32xf32>
    %14 = vector.broadcast %13 : vector<1x32xf32> to vector<32x32xf32>
    %15 = arith.addf %12, %14 : vector<32x32xf32>
    %cst_14 = arith.constant 0.000000e+00 : f32
    %16 = vector.broadcast %cst_14 : f32 to vector<32x32xf32>
    %17 = arith.maximumf %15, %16 : vector<32x32xf32>
    %c0_15 = arith.constant 0 : index
    %c0_16 = arith.constant 0 : index
    %18 = vector.load %arg8[%c0_15, %c0_16] : memref<32x32xf32, #tpu.memory_space<vmem>>, vector<32x32xf32>
    tpu.vector_store %arg8[%c0_15, %c0_16], %17 {strides = array<i32>} : memref<32x32xf32, #tpu.memory_space<vmem>>, vector<32x32xf32>,
    return
  }
  func.func @transform_0(%arg0: i32) -> (i32, i32) {
    %c0_i32 = arith.constant 0 : i32
    %c0_i32_0 = arith.constant 0 : i32
    return %arg0, %c0_i32 : i32, i32
  }
  func.func @transform_1(%arg0: i32) -> (i32, i32) {
    %c0_i32 = arith.constant 0 : i32
    %c0_i32_0 = arith.constant 0 : i32
    return %arg0, %c0_i32 : i32, i32
  }
  func.func @transform_2(%arg0: i32) -> (i32, i32) {
    %c0_i32 = arith.constant 0 : i32
    %c0_i32_0 = arith.constant 0 : i32
    return %arg0, %c0_i32 : i32, i32
  }
  func.func @transform_3(%arg0: i32) -> (i32, i32) {
    %c0_i32 = arith.constant 0 : i32
    %c0_i32_0 = arith.constant 0 : i32
    %c0_i32_1 = arith.constant 0 : i32
    return %c0_i32, %c0_i32_0 : i32, i32
  }
  func.func @transform_4(%arg0: i32) -> (i32, i32) {
    %c0_i32 = arith.constant 0 : i32
    %c0_i32_0 = arith.constant 0 : i32
    %c0_i32_1 = arith.constant 0 : i32
    return %c0_i32, %c0_i32_0 : i32, i32
  }
  func.func @transform_5(%arg0: i32) -> (i32, i32) {
    %c0_i32 = arith.constant 0 : i32
    %c0_i32_0 = arith.constant 0 : i32
    %c0_i32_1 = arith.constant 0 : i32
    return %c0_i32, %c0_i32_0 : i32, i32
  }
  func.func @transform_6(%arg0: i32) -> (i32, i32) {
    %c0_i32 = arith.constant 0 : i32
    %c0_i32_0 = arith.constant 0 : i32
    %c0_i32_1 = arith.constant 0 : i32
    return %c0_i32, %c0_i32_0 : i32, i32
  }
  func.func @transform_7(%arg0: i32) -> (i32, i32) {
    %c0_i32 = arith.constant 0 : i32
    %c0_i32_0 = arith.constant 0 : i32
    return %arg0, %c0_i32 : i32, i32
  }
}

module attributes {stable_mosaic.version = 11 : i64} {
  func.func @update_kernel(%arg0: i32, %arg1: memref<16x32xf32, #tpu.memory_space<vmem>>, %arg2: memref<16x32xf32, #tpu.memory_space<vmem>>, %arg3: memref<32x32xf32, #tpu.memory_space<vmem>>, %arg4: memref<32x32xf32, #tpu.memory_space<vmem>>, %arg5: memref<32x32xf32, #tpu.memory_space<vmem>>, %arg6: memref<1x32xf32, #tpu.memory_space<vmem>>, %arg7: memref<16x32xf32, #tpu.memory_space<vmem>>) attributes {dimension_semantics = [#tpu.dimension_semantics<parallel>], iteration_bounds = array<i64: 1>, scalar_prefetch = 0 : i64, scratch_operands = 0 : i64, tpu.core_type = #tpu.core_type<tc>, window_params = [{transform_indices = @transform_0, window_bounds = array<i64: 16, 32>}, {transform_indices = @transform_1, window_bounds = array<i64: 16, 32>}, {pipeline_mode = #tpu.pipeline_mode<synchronous>, transform_indices = @transform_2, window_bounds = array<i64: 32, 32>}, {pipeline_mode = #tpu.pipeline_mode<synchronous>, transform_indices = @transform_3, window_bounds = array<i64: 32, 32>}, {pipeline_mode = #tpu.pipeline_mode<synchronous>, transform_indices = @transform_4, window_bounds = array<i64: 32, 32>}, {pipeline_mode = #tpu.pipeline_mode<synchronous>, transform_indices = @transform_5, window_bounds = array<i64: 1, 32>}, {transform_indices = @transform_6, window_bounds = array<i64: 16, 32>}]} {
    %c0 = arith.constant 0 : index
    %c0_0 = arith.constant 0 : index
    %0 = vector.load %arg1[%c0, %c0_0] : memref<16x32xf32, #tpu.memory_space<vmem>>, vector<16x32xf32>
    %c0_1 = arith.constant 0 : index
    %c0_2 = arith.constant 0 : index
    %1 = vector.load %arg4[%c0_1, %c0_2] : memref<32x32xf32, #tpu.memory_space<vmem>>, vector<32x32xf32>
    %cst = arith.constant dense<0.000000e+00> : vector<16x32xf32>
    %2 = tpu.matmul %0, %1, %cst {dimension_numbers = #tpu.dot_dimension_numbers<[1], [0], [0], [1], [0, 0, 1, 1], [], []>} : vector<16x32xf32>, vector<32x32xf32>, vector<16x32xf32> -> vector<16x32xf32>
    %c0_3 = arith.constant 0 : index
    %c0_4 = arith.constant 0 : index
    %3 = vector.load %arg2[%c0_3, %c0_4] : memref<16x32xf32, #tpu.memory_space<vmem>>, vector<16x32xf32>
    %c0_5 = arith.constant 0 : index
    %c0_6 = arith.constant 0 : index
    %4 = vector.load %arg5[%c0_5, %c0_6] : memref<32x32xf32, #tpu.memory_space<vmem>>, vector<32x32xf32>
    %cst_7 = arith.constant dense<0.000000e+00> : vector<16x32xf32>
    %5 = tpu.matmul %3, %4, %cst_7 {dimension_numbers = #tpu.dot_dimension_numbers<[1], [0], [0], [1], [0, 0, 1, 1], [], []>} : vector<16x32xf32>, vector<32x32xf32>, vector<16x32xf32> -> vector<16x32xf32>
    %6 = arith.addf %2, %5 : vector<16x32xf32>
    %c0_8 = arith.constant 0 : index
    %c0_9 = arith.constant 0 : index
    %7 = vector.load %arg6[%c0_8, %c0_9] : memref<1x32xf32, #tpu.memory_space<vmem>>, vector<1x32xf32>
    %8 = vector.broadcast %7 : vector<1x32xf32> to vector<16x32xf32>
    %9 = arith.addf %6, %8 : vector<16x32xf32>
    %cst_10 = arith.constant 0.000000e+00 : f32
    %10 = vector.broadcast %cst_10 : f32 to vector<16x32xf32>
    %11 = arith.maximumf %9, %10 : vector<16x32xf32>
    %c0_11 = arith.constant 0 : index
    %c0_12 = arith.constant 0 : index
    %12 = vector.load %arg3[%c0_11, %c0_12] : memref<32x32xf32, #tpu.memory_space<vmem>>, vector<32x32xf32>
    %cst_13 = arith.constant dense<0.000000e+00> : vector<16x32xf32>
    %13 = tpu.matmul %0, %12, %cst_13 {dimension_numbers = #tpu.dot_dimension_numbers<[1], [0], [0], [1], [0, 0, 1, 1], [], []>} : vector<16x32xf32>, vector<32x32xf32>, vector<16x32xf32> -> vector<16x32xf32>
    %14 = arith.addf %13, %11 : vector<16x32xf32>
    %c0_14 = arith.constant 0 : index
    %c0_15 = arith.constant 0 : index
    %15 = vector.load %arg7[%c0_14, %c0_15] : memref<16x32xf32, #tpu.memory_space<vmem>>, vector<16x32xf32>
    tpu.vector_store %arg7[%c0_14, %c0_15], %14 {strides = array<i32>} : memref<16x32xf32, #tpu.memory_space<vmem>>, vector<16x32xf32>,
    return
  }
  func.func @transform_0(%arg0: i32) -> (i32, i32) {
    %c0_i32 = arith.constant 0 : i32
    %c0_i32_0 = arith.constant 0 : i32
    return %arg0, %c0_i32 : i32, i32
  }
  func.func @transform_1(%arg0: i32) -> (i32, i32) {
    %c0_i32 = arith.constant 0 : i32
    %c0_i32_0 = arith.constant 0 : i32
    return %arg0, %c0_i32 : i32, i32
  }
  func.func @transform_2(%arg0: i32) -> (i32, i32) {
    %c0_i32 = arith.constant 0 : i32
    %c0_i32_0 = arith.constant 0 : i32
    %c0_i32_1 = arith.constant 0 : i32
    return %c0_i32, %c0_i32_0 : i32, i32
  }
  func.func @transform_3(%arg0: i32) -> (i32, i32) {
    %c0_i32 = arith.constant 0 : i32
    %c0_i32_0 = arith.constant 0 : i32
    %c0_i32_1 = arith.constant 0 : i32
    return %c0_i32, %c0_i32_0 : i32, i32
  }
  func.func @transform_4(%arg0: i32) -> (i32, i32) {
    %c0_i32 = arith.constant 0 : i32
    %c0_i32_0 = arith.constant 0 : i32
    %c0_i32_1 = arith.constant 0 : i32
    return %c0_i32, %c0_i32_0 : i32, i32
  }
  func.func @transform_5(%arg0: i32) -> (i32, i32) {
    %c0_i32 = arith.constant 0 : i32
    %c0_i32_0 = arith.constant 0 : i32
    %c0_i32_1 = arith.constant 0 : i32
    return %c0_i32, %c0_i32_0 : i32, i32
  }
  func.func @transform_6(%arg0: i32) -> (i32, i32) {
    %c0_i32 = arith.constant 0 : i32
    %c0_i32_0 = arith.constant 0 : i32
    return %arg0, %c0_i32 : i32, i32
  }
}

module attributes {stable_mosaic.version = 11 : i64} {
  func.func @predict_kernel(%arg0: memref<2x32xf32, #tpu.memory_space<vmem>>, %arg1: memref<32x32xf32, #tpu.memory_space<vmem>>, %arg2: memref<1x32xf32, #tpu.memory_space<vmem>>, %arg3: memref<32x1xf32, #tpu.memory_space<vmem>>, %arg4: memref<1x1xf32, #tpu.memory_space<vmem>>, %arg5: memref<2x1xf32, #tpu.memory_space<vmem>>) attributes {dimension_semantics = [], scalar_prefetch = 0 : i64, scratch_operands = 0 : i64, tpu.core_type = #tpu.core_type<tc>} {
    %c0 = arith.constant 0 : index
    %c0_0 = arith.constant 0 : index
    %0 = vector.load %arg0[%c0, %c0_0] : memref<2x32xf32, #tpu.memory_space<vmem>>, vector<2x32xf32>
    %c0_1 = arith.constant 0 : index
    %c0_2 = arith.constant 0 : index
    %1 = vector.load %arg1[%c0_1, %c0_2] : memref<32x32xf32, #tpu.memory_space<vmem>>, vector<32x32xf32>
    %cst = arith.constant dense<0.000000e+00> : vector<2x32xf32>
    %2 = tpu.matmul %0, %1, %cst {dimension_numbers = #tpu.dot_dimension_numbers<[1], [0], [0], [1], [0, 0, 1, 1], [], []>} : vector<2x32xf32>, vector<32x32xf32>, vector<2x32xf32> -> vector<2x32xf32>
    %c0_3 = arith.constant 0 : index
    %c0_4 = arith.constant 0 : index
    %3 = vector.load %arg2[%c0_3, %c0_4] : memref<1x32xf32, #tpu.memory_space<vmem>>, vector<1x32xf32>
    %4 = vector.broadcast %3 : vector<1x32xf32> to vector<2x32xf32>
    %5 = arith.addf %2, %4 : vector<2x32xf32>
    %cst_5 = arith.constant 0.000000e+00 : f32
    %6 = vector.broadcast %cst_5 : f32 to vector<2x32xf32>
    %7 = arith.maximumf %5, %6 : vector<2x32xf32>
    %c0_6 = arith.constant 0 : index
    %c0_7 = arith.constant 0 : index
    %8 = vector.load %arg3[%c0_6, %c0_7] : memref<32x1xf32, #tpu.memory_space<vmem>>, vector<32x1xf32>
    %cst_8 = arith.constant dense<0.000000e+00> : vector<2x1xf32>
    %9 = tpu.matmul %7, %8, %cst_8 {dimension_numbers = #tpu.dot_dimension_numbers<[1], [0], [0], [1], [0, 0, 1, 1], [], []>} : vector<2x32xf32>, vector<32x1xf32>, vector<2x1xf32> -> vector<2x1xf32>
    %c0_9 = arith.constant 0 : index
    %c0_10 = arith.constant 0 : index
    %10 = vector.load %arg4[%c0_9, %c0_10] : memref<1x1xf32, #tpu.memory_space<vmem>>, vector<1x1xf32>
    %11 = vector.broadcast %10 : vector<1x1xf32> to vector<2x1xf32>
    %12 = arith.addf %9, %11 : vector<2x1xf32>
    %c0_11 = arith.constant 0 : index
    %c0_12 = arith.constant 0 : index
    %13 = vector.load %arg5[%c0_11, %c0_12] : memref<2x1xf32, #tpu.memory_space<vmem>>, vector<2x1xf32>
    tpu.vector_store %arg5[%c0_11, %c0_12], %12 {strides = array<i32>} : memref<2x1xf32, #tpu.memory_space<vmem>>, vector<2x1xf32>,
    return
  }
}

</mosaic_0001>

<llo_original>
// kernel: equivariant_gnn_forward.6
$region0: #{equivariant_gnn_forward.6}
  #allocation0 [shape = 'u32[]', space=smem, size = 0x4, offset = 0x4, fixed_abs, tag = 'smem constant byte address 0x4 - core index']
  #allocation1 [shape = 'u32[144,128]{1,0:T(1,128)}', space=vmem, size = 0x12000, scoped, tag = 'internal scratch']
  %s0 = inlined_call_operand.vmem [shape: f32[16,32], index: 0, kind: input, shape index: {}]
  %s1 = inlined_call_operand.vmem [shape: f32[16,32], index: 1, kind: input, shape index: {}]
  %s2 = inlined_call_operand.vmem [shape: f32[32,32], index: 2, kind: input, shape index: {}]
  %s3 = inlined_call_operand.vmem [shape: f32[32,32], index: 3, kind: input, shape index: {}]
  %s4 = inlined_call_operand.vmem [shape: f32[32,32], index: 4, kind: input, shape index: {}]
  %s5 = inlined_call_operand.vmem [shape: f32[1,32], index: 5, kind: input, shape index: {}]
  %s6 = inlined_call_operand.vmem [shape: f32[16,32], index: 6, kind: output, shape index: {}]
  %s7 = sld [smem:[#allocation0]]
  $region34: #{equivariant_gnn_forward.6} parent=0
    _
  %s9 = ssub.s32 1, %s7
  %s10 = scalar_select 0, %s9, %s7
  // Predicated region
  $region2: #{equivariant_gnn_forward.6} parent=0 // pred_check
    _
  $region3: #{equivariant_gnn_forward.6} parent=0 // pred_check_branch
    %12 = sbr.rel (0) target = $region5
  $region4: #{equivariant_gnn_forward.6} parent=0 // pred_region
    _
  $region5: #{equivariant_gnn_forward.6} parent=0 // pred_fallthru
    _
  // Predicated region
  $region6: #{equivariant_gnn_forward.6} parent=0 // pred_check
    _
  $region7: #{equivariant_gnn_forward.6} parent=0 // pred_check_branch
    %14 = sbr.rel (0) target = $region9
  $region8: #{equivariant_gnn_forward.6} parent=0 // pred_region
    _
  $region9: #{equivariant_gnn_forward.6} parent=0 // pred_fallthru
    _
  // Predicated region
  $region10: #{equivariant_gnn_forward.6} parent=0 // pred_check
    _
  $region11: #{equivariant_gnn_forward.6} parent=0 // pred_check_branch
    %16 = sbr.rel (0) target = $region13
  $region12: #{equivariant_gnn_forward.6} parent=0 // pred_region
    _
  $region13: #{equivariant_gnn_forward.6} parent=0 // pred_fallthru
    _
  // Predicated region
  $region14: #{equivariant_gnn_forward.6} parent=0 // pred_check
    _
  $region15: #{equivariant_gnn_forward.6} parent=0 // pred_check_branch
    %18 = sbr.rel (0) target = $region17
  $region16: #{equivariant_gnn_forward.6} parent=0 // pred_region
    _
  $region17: #{equivariant_gnn_forward.6} parent=0 // pred_fallthru
    _
  // Predicated region
  $region18: #{equivariant_gnn_forward.6} parent=0 // pred_check
    _
  $region19: #{equivariant_gnn_forward.6} parent=0 // pred_check_branch
    %20 = sbr.rel (0) target = $region21
  $region20: #{equivariant_gnn_forward.6} parent=0 // pred_region
    _
  $region21: #{equivariant_gnn_forward.6} parent=0 // pred_fallthru
    _
  // Predicated region
  $region22: #{equivariant_gnn_forward.6} parent=0 // pred_check
    _
  $region23: #{equivariant_gnn_forward.6} parent=0 // pred_check_branch
    %22 = sbr.rel (0) target = $region25
  $region24: #{equivariant_gnn_forward.6} parent=0 // pred_region
    _
  $region25: #{equivariant_gnn_forward.6} parent=0 // pred_fallthru
    _
  %v23 = vld [vmem:[%s0] sm:$0xff]
  %v24 = vld [vmem:[%s0 + $0x8] sm:$0xff]
  %v25 = vld [vmem:[%s3] sm:$0xff]
  %v26 = vld [vmem:[%s3 + $0x8] sm:$0xff]
  %v27 = vld [vmem:[%s3 + $0x10] sm:$0xff]
  %v28 = vld [vmem:[%s3 + $0x18] sm:$0xff]
  %v29 = vld [vmem:[%s1] sm:$0xff]
  %v30 = vld [vmem:[%s1 + $0x8] sm:$0xff]
  %v31 = vld [vmem:[%s4] sm:$0xff]
  %v32 = vld [vmem:[%s4 + $0x8] sm:$0xff]
  %v33 = vld [vmem:[%s4 + $0x10] sm:$0xff]
  %v34 = vld [vmem:[%s4 + $0x18] sm:$0xff]
  %vm35 = vcmask 261120
  %v37 = vsel %vm35, %v29, 0
  %v40 = vsel %vm35, %v30, 0
  %42 = vmatprep.subr.mxu0 0.0
  %43 = vmatpush1.msra.mxu0 %v31
  %44 = vmatprep.subr.mxu0 0.0
  %45 = vmatpush1.msra.mxu0 %v32
  %46 = vmatprep.subr.mxu0 0.0
  %47 = vmatpush1.msra.mxu0 %v33
  %48 = vmatprep.subr.mxu0 0.0
  %49 = vmatpush1.msra.mxu0 %v34
  %50 = vmatprep.subr.mxu0 0.0
  %51 = vmatpush1.msra.mxu0 0.0
  %52 = vmatprep.subr.mxu0 0.0
  %53 = vmatpush1.msra.mxu0 0.0
  %54 = vmatprep.subr.mxu0 0.0
  %55 = vmatpush1.msra.mxu0 0.0
  %56 = vmatprep.subr.mxu0 0.0
  %57 = vmatpush1.msra.mxu0 0.0
  %58 = vmatprep.subr.mxu0 0.0
  %59 = vmatpush1.msra.mxu0 0.0
  %60 = vmatprep.subr.mxu0 0.0
  %61 = vmatpush1.msra.mxu0 0.0
  %62 = vmatprep.subr.mxu0 0.0
  %63 = vmatpush1.msra.mxu0 0.0
  %64 = vmatprep.subr.mxu0 0.0
  %65 = vmatpush1.msra.mxu0 0.0
  %66 = vmatprep.subr.mxu0 0.0
  %67 = vmatpush1.msra.mxu0 0.0
  %68 = vmatprep.subr.mxu0 0.0
  %69 = vmatpush1.msra.mxu0 0.0
  %70 = vmatprep.subr.mxu0 0.0
  %71 = vmatpush1.msra.mxu0 0.0
  %72 = vmatprep.subr.mxu0 0.0
  %73 = vmatpush1.msra.mxu0 0.0
  %74 = vmatprep.subr.mxu0 0.0
  %75 = vmatpush1.msra.mxu0 0.0
  %76 = vmatprep.subr.mxu0 0.0
  %77 = vmatpush1.msra.mxu0 0.0
  %78 = vmatprep.subr.mxu0 0.0
  %79 = vmatpush1.msra.mxu0 0.0
  %80 = vmatprep.subr.mxu0 0.0
  %81 = vmatpush1.msra.mxu0 0.0
  %82 = vmatprep.subr.mxu0 0.0
  %83 = vmatpush1.msra.mxu0 0.0
  %84 = vmatprep.subr.mxu0 0.0
  %85 = vmatpush1.msra.mxu0 0.0
  %86 = vmatprep.subr.mxu0 0.0
  %87 = vmatpush1.msra.mxu0 0.0
  %88 = vmatprep.subr.mxu0 0.0
  %89 = vmatpush1.msra.mxu0 0.0
  %90 = vmatprep.subr.mxu0 0.0
  %91 = vmatpush1.msra.mxu0 0.0
  %92 = vmatprep.subr.mxu0 0.0
  %93 = vmatpush1.msra.mxu0 0.0
  %94 = vmatprep.subr.mxu0 0.0
  %95 = vmatpush1.msra.mxu0 0.0
  %96 = vmatprep.subr.mxu0 0.0
  %97 = vmatpush1.msra.mxu0 0.0
  %98 = vmatprep.subr.mxu0 0.0
  %99 = vmatpush1.msra.mxu0 0.0
  %100 = vmatprep.subr.mxu0 0.0
  %101 = vmatpush1.msra.mxu0 0.0
  %102 = vmatprep.subr.mxu0 0.0
  %103 = vmatpush1.msra.mxu0 0.0
  %104 = vmatprep.subr.mxu0 0.0
  %105 = vmatpush1.msra.mxu0 0.0
  %106 = vmatprep.mubr.f32.mxu0 0.0
  %107 = vmatmul.mubr.f32.gmra.mrb[0].mxu0 %v37
  %v108 = vpop.f32.mrb[0].mxu0
  %v109 = vadd.f32 0.0, %v108
  %v110 = vpop.f32.mrb[0].mxu0
  %111 = vmatprep.mubr.f32.mxu0 0.0
  %112 = vmatmul.mubr.f32.gmra.mrb[0].mxu0 %v40
  %v113 = vpop.f32.mrb[0].mxu0
  %v114 = vadd.f32 0.0, %v113
  %v115 = vpop.f32.mrb[0].mxu0
  %116 = vdwg.mxu0
  %v118 = vsel %vm35, %v23, 0
  %v121 = vsel %vm35, %v24, 0
  %123 = vmatprep.subr.mxu0 0.0
  %124 = vmatpush1.msra.mxu0 %v25
  %125 = vmatprep.subr.mxu0 0.0
  %126 = vmatpush1.msra.mxu0 %v26
  %127 = vmatprep.subr.mxu0 0.0
  %128 = vmatpush1.msra.mxu0 %v27
  %129 = vmatprep.subr.mxu0 0.0
  %130 = vmatpush1.msra.mxu0 %v28
  %131 = vmatprep.subr.mxu0 0.0
  %132 = vmatpush1.msra.mxu0 0.0
  %133 = vmatprep.subr.mxu0 0.0
  %134 = vmatpush1.msra.mxu0 0.0
  %135 = vmatprep.subr.mxu0 0.0
  %136 = vmatpush1.msra.mxu0 0.0
  %137 = vmatprep.subr.mxu0 0.0
  %138 = vmatpush1.msra.mxu0 0.0
  %139 = vmatprep.subr.mxu0 0.0
  %140 = vmatpush1.msra.mxu0 0.0
  %141 = vmatprep.subr.mxu0 0.0
  %142 = vmatpush1.msra.mxu0 0.0
  %143 = vmatprep.subr.mxu0 0.0
  %144 = vmatpush1.msra.mxu0 0.0
  %145 = vmatprep.subr.mxu0 0.0
  %146 = vmatpush1.msra.mxu0 0.0
  %147 = vmatprep.subr.mxu0 0.0
  %148 = vmatpush1.msra.mxu0 0.0
  %149 = vmatprep.subr.mxu0 0.0
  %150 = vmatpush1.msra.mxu0 0.0
  %151 = vmatprep.subr.mxu0 0.0
  %152 = vmatpush1.msra.mxu0 0.0
  %153 = vmatprep.subr.mxu0 0.0
  %154 = vmatpush1.msra.mxu0 0.0
  %155 = vmatprep.subr.mxu0 0.0
  %156 = vmatpush1.msra.mxu0 0.0
  %157 = vmatprep.subr.mxu0 0.0
  %158 = vmatpush1.msra.mxu0 0.0
  %159 = vmatprep.subr.mxu0 0.0
  %160 = vmatpush1.msra.mxu0 0.0
  %161 = vmatprep.subr.mxu0 0.0
  %162 = vmatpush1.msra.mxu0 0.0
  %163 = vmatprep.subr.mxu0 0.0
  %164 = vmatpush1.msra.mxu0 0.0
  %165 = vmatprep.subr.mxu0 0.0
  %166 = vmatpush1.msra.mxu0 0.0
  %167 = vmatprep.subr.mxu0 0.0
  %168 = vmatpush1.msra.mxu0 0.0
  %169 = vmatprep.subr.mxu0 0.0
  %170 = vmatpush1.msra.mxu0 0.0
  %171 = vmatprep.subr.mxu0 0.0
  %172 = vmatpush1.msra.mxu0 0.0
  %173 = vmatprep.subr.mxu0 0.0
  %174 = vmatpush1.msra.mxu0 0.0
  %175 = vmatprep.subr.mxu0 0.0
  %176 = vmatpush1.msra.mxu0 0.0
  %177 = vmatprep.subr.mxu0 0.0
  %178 = vmatpush1.msra.mxu0 0.0
  %179 = vmatprep.subr.mxu0 0.0
  %180 = vmatpush1.msra.mxu0 0.0
  %181 = vmatprep.subr.mxu0 0.0
  %182 = vmatpush1.msra.mxu0 0.0
  %183 = vmatprep.subr.mxu0 0.0
  %184 = vmatpush1.msra.mxu0 0.0
  %185 = vmatprep.subr.mxu0 0.0
  %186 = vmatpush1.msra.mxu0 0.0
  %187 = vmatprep.mubr.f32.mxu0 0.0
  %188 = vmatmul.mubr.f32.gmra.mrb[0].mxu0 %v118
  %v189 = vpop.f32.mrb[0].mxu0
  %v190 = vadd.f32 %v109, %v189
  %v191 = vpop.f32.mrb[0].mxu0
  %192 = vmatprep.mubr.f32.mxu0 0.0
  %193 = vmatmul.mubr.f32.gmra.mrb[0].mxu0 %v121
  %v194 = vpop.f32.mrb[0].mxu0
  %v195 = vadd.f32 %v114, %v194
  %v196 = vpop.f32.mrb[0].mxu0
  %197 = vdwg.mxu0
  %v198 = vld [vmem:[%s5] sm:$0x1]
  %v200 = vlaneseq
  %v201 = vshrl.u32 %v200, 7
  %v202 = vsub.s32 0, %v201
  %v203 = vrot.slane %v198, %v202
  %v205 = vadd.f32 %v190, %v203
  %v206 = vadd.f32 %v195, %v203
  %v207 = vmax.f32 %v205, 0.0
  %v208 = vmax.f32 %v206, 0.0
  %v209 = vld [vmem:[%s2] sm:$0xff]
  %v210 = vld [vmem:[%s2 + $0x8] sm:$0xff]
  %v211 = vld [vmem:[%s2 + $0x10] sm:$0xff]
  %v212 = vld [vmem:[%s2 + $0x18] sm:$0xff]
  %213 = vmatprep.subr.mxu0 0.0
  %214 = vmatpush1.msra.mxu0 %v209
  %215 = vmatprep.subr.mxu0 0.0
  %216 = vmatpush1.msra.mxu0 %v210
  %217 = vmatprep.subr.mxu0 0.0
  %218 = vmatpush1.msra.mxu0 %v211
  %219 = vmatprep.subr.mxu0 0.0
  %220 = vmatpush1.msra.mxu0 %v212
  %221 = vmatprep.subr.mxu0 0.0
  %222 = vmatpush1.msra.mxu0 0.0
  %223 = vmatprep.subr.mxu0 0.0
  %224 = vmatpush1.msra.mxu0 0.0
  %225 = vmatprep.subr.mxu0 0.0
  %226 = vmatpush1.msra.mxu0 0.0
  %227 = vmatprep.subr.mxu0 0.0
  %228 = vmatpush1.msra.mxu0 0.0
  %229 = vmatprep.subr.mxu0 0.0
  %230 = vmatpush1.msra.mxu0 0.0
  %231 = vmatprep.subr.mxu0 0.0
  %232 = vmatpush1.msra.mxu0 0.0
  %233 = vmatprep.subr.mxu0 0.0
  %234 = vmatpush1.msra.mxu0 0.0
  %235 = vmatprep.subr.mxu0 0.0
  %236 = vmatpush1.msra.mxu0 0.0
  %237 = vmatprep.subr.mxu0 0.0
  %238 = vmatpush1.msra.mxu0 0.0
  %239 = vmatprep.subr.mxu0 0.0
  %240 = vmatpush1.msra.mxu0 0.0
  %241 = vmatprep.subr.mxu0 0.0
  %242 = vmatpush1.msra.mxu0 0.0
  %243 = vmatprep.subr.mxu0 0.0
  %244 = vmatpush1.msra.mxu0 0.0
  %245 = vmatprep.subr.mxu0 0.0
  %246 = vmatpush1.msra.mxu0 0.0
  %247 = vmatprep.subr.mxu0 0.0
  %248 = vmatpush1.msra.mxu0 0.0
  %249 = vmatprep.subr.mxu0 0.0
  %250 = vmatpush1.msra.mxu0 0.0
  %251 = vmatprep.subr.mxu0 0.0
  %252 = vmatpush1.msra.mxu0 0.0
  %253 = vmatprep.subr.mxu0 0.0
  %254 = vmatpush1.msra.mxu0 0.0
  %255 = vmatprep.subr.mxu0 0.0
  %256 = vmatpush1.msra.mxu0 0.0
  %257 = vmatprep.subr.mxu0 0.0
  %258 = vmatpush1.msra.mxu0 0.0
  %259 = vmatprep.subr.mxu0 0.0
  %260 = vmatpush1.msra.mxu0 0.0
  %261 = vmatprep.subr.mxu0 0.0
  %262 = vmatpush1.msra.mxu0 0.0
  %263 = vmatprep.subr.mxu0 0.0
  %264 = vmatpush1.msra.mxu0 0.0
  %265 = vmatprep.subr.mxu0 0.0
  %266 = vmatpush1.msra.mxu0 0.0
  %267 = vmatprep.subr.mxu0 0.0
  %268 = vmatpush1.msra.mxu0 0.0
  %269 = vmatprep.subr.mxu0 0.0
  %270 = vmatpush1.msra.mxu0 0.0
  %271 = vmatprep.subr.mxu0 0.0
  %272 = vmatpush1.msra.mxu0 0.0
  %273 = vmatprep.subr.mxu0 0.0
  %274 = vmatpush1.msra.mxu0 0.0
  %275 = vmatprep.subr.mxu0 0.0
  %276 = vmatpush1.msra.mxu0 0.0
  %277 = vmatprep.mubr.f32.mxu0 0.0
  %278 = vmatmul.mubr.f32.gmra.mrb[0].mxu0 %v118
  %v279 = vpop.f32.mrb[0].mxu0
  %v280 = vadd.f32 %v207, %v279
  %v281 = vpop.f32.mrb[0].mxu0
  %282 = vmatprep.mubr.f32.mxu0 0.0
  %283 = vmatmul.mubr.f32.gmra.mrb[0].mxu0 %v121
  %v284 = vpop.f32.mrb[0].mxu0
  %v285 = vadd.f32 %v208, %v284
  %v286 = vpop.f32.mrb[0].mxu0
  %287 = vdwg.mxu0
  %288 = vst.msk [vmem:[%s6] sm:$0xff] %vm35, %v280
  %289 = vst.msk [vmem:[%s6 + $0x8] sm:$0xff] %vm35, %v285
  // Predicated region
  $region26: #{equivariant_gnn_forward.6} parent=0 // pred_check
    _
  $region27: #{equivariant_gnn_forward.6} parent=0 // pred_check_branch
    %291 = sbr.rel (0) target = $region29
  $region28: #{equivariant_gnn_forward.6} parent=0 // pred_region
    _
  $region29: #{equivariant_gnn_forward.6} parent=0 // pred_fallthru
    _
  // Predicated region
  $region30: #{equivariant_gnn_forward.6} parent=0 // pred_check
    _
  $region31: #{equivariant_gnn_forward.6} parent=0 // pred_check_branch
    %293 = sbr.rel (0) target = $region33
  $region32: #{equivariant_gnn_forward.6} parent=0 // pred_region
    _
  $region33: #{equivariant_gnn_forward.6} parent=0 // pred_fallthru
    _

// kernel: equivariant_gnn_forward.5
$region0: #{equivariant_gnn_forward.5}
  #allocation0 [shape = 'u32[]', space=smem, size = 0x4, offset = 0x4, fixed_abs, tag = 'smem constant byte address 0x4 - core index']
  #allocation1 [shape = 'u32[144,128]{1,0:T(1,128)}', space=vmem, size = 0x12000, scoped, tag = 'internal scratch']
  %s0 = inlined_call_operand.vmem [shape: f32[32,32], index: 0, kind: input, shape index: {}]
  %s1 = inlined_call_operand.vmem [shape: f32[32,32], index: 1, kind: input, shape index: {}]
  %s2 = inlined_call_operand.vmem [shape: f32[32,1], index: 2, kind: input, shape index: {}]
  %s3 = inlined_call_operand.vmem [shape: f32[32,32], index: 3, kind: input, shape index: {}]
  %s4 = inlined_call_operand.vmem [shape: f32[32,32], index: 4, kind: input, shape index: {}]
  %s5 = inlined_call_operand.vmem [shape: f32[1,32], index: 5, kind: input, shape index: {}]
  %s6 = inlined_call_operand.vmem [shape: f32[1,32], index: 6, kind: input, shape index: {}]
  %s7 = inlined_call_operand.vmem [shape: f32[32,32], index: 7, kind: output, shape index: {}]
  %s8 = sld [smem:[#allocation0]]
  $region38: #{equivariant_gnn_forward.5} parent=0
    _
  %s10 = ssub.s32 1, %s8
  %s11 = scalar_select 0, %s10, %s8
  // Predicated region
  $region2: #{equivariant_gnn_forward.5} parent=0 // pred_check
    _
  $region3: #{equivariant_gnn_forward.5} parent=0 // pred_check_branch
    %13 = sbr.rel (0) target = $region5
  $region4: #{equivariant_gnn_forward.5} parent=0 // pred_region
    _
  $region5: #{equivariant_gnn_forward.5} parent=0 // pred_fallthru
    _
  // Predicated region
  $region6: #{equivariant_gnn_forward.5} parent=0 // pred_check
    _
  $region7: #{equivariant_gnn_forward.5} parent=0 // pred_check_branch
    %15 = sbr.rel (0) target = $region9
  $region8: #{equivariant_gnn_forward.5} parent=0 // pred_region
    _
  $region9: #{equivariant_gnn_forward.5} parent=0 // pred_fallthru
    _
  // Predicated region
  $region10: #{equivariant_gnn_forward.5} parent=0 // pred_check
    _
  $region11: #{equivariant_gnn_forward.5} parent=0 // pred_check_branch
    %17 = sbr.rel (0) target = $region13
  $region12: #{equivariant_gnn_forward.5} parent=0 // pred_region
    _
  $region13: #{equivariant_gnn_forward.5} parent=0 // pred_fallthru
    _
  // Predicated region
  $region14: #{equivariant_gnn_forward.5} parent=0 // pred_check
    _
  $region15: #{equivariant_gnn_forward.5} parent=0 // pred_check_branch
    %19 = sbr.rel (0) target = $region17
  $region16: #{equivariant_gnn_forward.5} parent=0 // pred_region
    _
  $region17: #{equivariant_gnn_forward.5} parent=0 // pred_fallthru
    _
  // Predicated region
  $region18: #{equivariant_gnn_forward.5} parent=0 // pred_check
    _
  $region19: #{equivariant_gnn_forward.5} parent=0 // pred_check_branch
    %21 = sbr.rel (0) target = $region21
  $region20: #{equivariant_gnn_forward.5} parent=0 // pred_region
    _
  $region21: #{equivariant_gnn_forward.5} parent=0 // pred_fallthru
    _
  // Predicated region
  $region22: #{equivariant_gnn_forward.5} parent=0 // pred_check
    _
  $region23: #{equivariant_gnn_forward.5} parent=0 // pred_check_branch
    %23 = sbr.rel (0) target = $region25
  $region24: #{equivariant_gnn_forward.5} parent=0 // pred_region
    _
  $region25: #{equivariant_gnn_forward.5} parent=0 // pred_fallthru
    _
  // Predicated region
  $region26: #{equivariant_gnn_forward.5} parent=0 // pred_check
    _
  $region27: #{equivariant_gnn_forward.5} parent=0 // pred_check_branch
    %25 = sbr.rel (0) target = $region29
  $region28: #{equivariant_gnn_forward.5} parent=0 // pred_region
    _
  $region29: #{equivariant_gnn_forward.5} parent=0 // pred_fallthru
    _
  %v26 = vld [vmem:[%s0] sm:$0xff]
  %v27 = vld [vmem:[%s0 + $0x8] sm:$0xff]
  %v28 = vld [vmem:[%s0 + $0x10] sm:$0xff]
  %v29 = vld [vmem:[%s0 + $0x18] sm:$0xff]
  %v30 = vld [vmem:[%s3] sm:$0xff]
  %v31 = vld [vmem:[%s3 + $0x8] sm:$0xff]
  %v32 = vld [vmem:[%s3 + $0x10] sm:$0xff]
  %v33 = vld [vmem:[%s3 + $0x18] sm:$0xff]
  %v34 = vld [vmem:[%s1] sm:$0xff]
  %v35 = vld [vmem:[%s1 + $0x8] sm:$0xff]
  %v36 = vld [vmem:[%s1 + $0x10] sm:$0xff]
  %v37 = vld [vmem:[%s1 + $0x18] sm:$0xff]
  %v38 = vld [vmem:[%s4] sm:$0xff]
  %v39 = vld [vmem:[%s4 + $0x8] sm:$0xff]
  %v40 = vld [vmem:[%s4 + $0x10] sm:$0xff]
  %v41 = vld [vmem:[%s4 + $0x18] sm:$0xff]
  %vm42 = vcmask 261120
  %v44 = vsel %vm42, %v34, 0
  %v47 = vsel %vm42, %v35, 0
  %v50 = vsel %vm42, %v36, 0
  %v53 = vsel %vm42, %v37, 0
  %55 = vmatprep.subr.mxu0 0.0
  %56 = vmatpush1.msra.mxu0 %v38
  %57 = vmatprep.subr.mxu0 0.0
  %58 = vmatpush1.msra.mxu0 %v39
  %59 = vmatprep.subr.mxu0 0.0
  %60 = vmatpush1.msra.mxu0 %v40
  %61 = vmatprep.subr.mxu0 0.0
  %62 = vmatpush1.msra.mxu0 %v41
  %63 = vmatprep.subr.mxu0 0.0
  %64 = vmatpush1.msra.mxu0 0.0
  %65 = vmatprep.subr.mxu0 0.0
  %66 = vmatpush1.msra.mxu0 0.0
  %67 = vmatprep.subr.mxu0 0.0
  %68 = vmatpush1.msra.mxu0 0.0
  %69 = vmatprep.subr.mxu0 0.0
  %70 = vmatpush1.msra.mxu0 0.0
  %71 = vmatprep.subr.mxu0 0.0
  %72 = vmatpush1.msra.mxu0 0.0
  %73 = vmatprep.subr.mxu0 0.0
  %74 = vmatpush1.msra.mxu0 0.0
  %75 = vmatprep.subr.mxu0 0.0
  %76 = vmatpush1.msra.mxu0 0.0
  %77 = vmatprep.subr.mxu0 0.0
  %78 = vmatpush1.msra.mxu0 0.0
  %79 = vmatprep.subr.mxu0 0.0
  %80 = vmatpush1.msra.mxu0 0.0
  %81 = vmatprep.subr.mxu0 0.0
  %82 = vmatpush1.msra.mxu0 0.0
  %83 = vmatprep.subr.mxu0 0.0
  %84 = vmatpush1.msra.mxu0 0.0
  %85 = vmatprep.subr.mxu0 0.0
  %86 = vmatpush1.msra.mxu0 0.0
  %87 = vmatprep.subr.mxu0 0.0
  %88 = vmatpush1.msra.mxu0 0.0
  %89 = vmatprep.subr.mxu0 0.0
  %90 = vmatpush1.msra.mxu0 0.0
  %91 = vmatprep.subr.mxu0 0.0
  %92 = vmatpush1.msra.mxu0 0.0
  %93 = vmatprep.subr.mxu0 0.0
  %94 = vmatpush1.msra.mxu0 0.0
  %95 = vmatprep.subr.mxu0 0.0
  %96 = vmatpush1.msra.mxu0 0.0
  %97 = vmatprep.subr.mxu0 0.0
  %98 = vmatpush1.msra.mxu0 0.0
  %99 = vmatprep.subr.mxu0 0.0
  %100 = vmatpush1.msra.mxu0 0.0
  %101 = vmatprep.subr.mxu0 0.0
  %102 = vmatpush1.msra.mxu0 0.0
  %103 = vmatprep.subr.mxu0 0.0
  %104 = vmatpush1.msra.mxu0 0.0
  %105 = vmatprep.subr.mxu0 0.0
  %106 = vmatpush1.msra.mxu0 0.0
  %107 = vmatprep.subr.mxu0 0.0
  %108 = vmatpush1.msra.mxu0 0.0
  %109 = vmatprep.subr.mxu0 0.0
  %110 = vmatpush1.msra.mxu0 0.0
  %111 = vmatprep.subr.mxu0 0.0
  %112 = vmatpush1.msra.mxu0 0.0
  %113 = vmatprep.subr.mxu0 0.0
  %114 = vmatpush1.msra.mxu0 0.0
  %115 = vmatprep.subr.mxu0 0.0
  %116 = vmatpush1.msra.mxu0 0.0
  %117 = vmatprep.subr.mxu0 0.0
  %118 = vmatpush1.msra.mxu0 0.0
  %119 = vmatprep.mubr.f32.mxu0 0.0
  %120 = vmatmul.mubr.f32.gmra.mrb[0].mxu0 %v44
  %v121 = vpop.f32.mrb[0].mxu0
  %v122 = vadd.f32 0.0, %v121
  %v123 = vpop.f32.mrb[0].mxu0
  %124 = vmatprep.mubr.f32.mxu0 0.0
  %125 = vmatmul.mubr.f32.gmra.mrb[0].mxu0 %v47
  %v126 = vpop.f32.mrb[0].mxu0
  %v127 = vadd.f32 0.0, %v126
  %v128 = vpop.f32.mrb[0].mxu0
  %129 = vmatprep.mubr.f32.mxu0 0.0
  %130 = vmatmul.mubr.f32.gmra.mrb[0].mxu0 %v50
  %v131 = vpop.f32.mrb[0].mxu0
  %v132 = vadd.f32 0.0, %v131
  %v133 = vpop.f32.mrb[0].mxu0
  %134 = vmatprep.mubr.f32.mxu0 0.0
  %135 = vmatmul.mubr.f32.gmra.mrb[0].mxu0 %v53
  %v136 = vpop.f32.mrb[0].mxu0
  %v137 = vadd.f32 0.0, %v136
  %v138 = vpop.f32.mrb[0].mxu0
  %139 = vdwg.mxu0
  %v141 = vsel %vm42, %v26, 0
  %v144 = vsel %vm42, %v27, 0
  %v147 = vsel %vm42, %v28, 0
  %v150 = vsel %vm42, %v29, 0
  %152 = vmatprep.subr.mxu0 0.0
  %153 = vmatpush1.msra.mxu0 %v30
  %154 = vmatprep.subr.mxu0 0.0
  %155 = vmatpush1.msra.mxu0 %v31
  %156 = vmatprep.subr.mxu0 0.0
  %157 = vmatpush1.msra.mxu0 %v32
  %158 = vmatprep.subr.mxu0 0.0
  %159 = vmatpush1.msra.mxu0 %v33
  %160 = vmatprep.subr.mxu0 0.0
  %161 = vmatpush1.msra.mxu0 0.0
  %162 = vmatprep.subr.mxu0 0.0
  %163 = vmatpush1.msra.mxu0 0.0
  %164 = vmatprep.subr.mxu0 0.0
  %165 = vmatpush1.msra.mxu0 0.0
  %166 = vmatprep.subr.mxu0 0.0
  %167 = vmatpush1.msra.mxu0 0.0
  %168 = vmatprep.subr.mxu0 0.0
  %169 = vmatpush1.msra.mxu0 0.0
  %170 = vmatprep.subr.mxu0 0.0
  %171 = vmatpush1.msra.mxu0 0.0
  %172 = vmatprep.subr.mxu0 0.0
  %173 = vmatpush1.msra.mxu0 0.0
  %174 = vmatprep.subr.mxu0 0.0
  %175 = vmatpush1.msra.mxu0 0.0
  %176 = vmatprep.subr.mxu0 0.0
  %177 = vmatpush1.msra.mxu0 0.0
  %178 = vmatprep.subr.mxu0 0.0
  %179 = vmatpush1.msra.mxu0 0.0
  %180 = vmatprep.subr.mxu0 0.0
  %181 = vmatpush1.msra.mxu0 0.0
  %182 = vmatprep.subr.mxu0 0.0
  %183 = vmatpush1.msra.mxu0 0.0
  %184 = vmatprep.subr.mxu0 0.0
  %185 = vmatpush1.msra.mxu0 0.0
  %186 = vmatprep.subr.mxu0 0.0
  %187 = vmatpush1.msra.mxu0 0.0
  %188 = vmatprep.subr.mxu0 0.0
  %189 = vmatpush1.msra.mxu0 0.0
  %190 = vmatprep.subr.mxu0 0.0
  %191 = vmatpush1.msra.mxu0 0.0
  %192 = vmatprep.subr.mxu0 0.0
  %193 = vmatpush1.msra.mxu0 0.0
  %194 = vmatprep.subr.mxu0 0.0
  %195 = vmatpush1.msra.mxu0 0.0
  %196 = vmatprep.subr.mxu0 0.0
  %197 = vmatpush1.msra.mxu0 0.0
  %198 = vmatprep.subr.mxu0 0.0
  %199 = vmatpush1.msra.mxu0 0.0
  %200 = vmatprep.subr.mxu0 0.0
  %201 = vmatpush1.msra.mxu0 0.0
  %202 = vmatprep.subr.mxu0 0.0
  %203 = vmatpush1.msra.mxu0 0.0
  %204 = vmatprep.subr.mxu0 0.0
  %205 = vmatpush1.msra.mxu0 0.0
  %206 = vmatprep.subr.mxu0 0.0
  %207 = vmatpush1.msra.mxu0 0.0
  %208 = vmatprep.subr.mxu0 0.0
  %209 = vmatpush1.msra.mxu0 0.0
  %210 = vmatprep.subr.mxu0 0.0
  %211 = vmatpush1.msra.mxu0 0.0
  %212 = vmatprep.subr.mxu0 0.0
  %213 = vmatpush1.msra.mxu0 0.0
  %214 = vmatprep.subr.mxu0 0.0
  %215 = vmatpush1.msra.mxu0 0.0
  %216 = vmatprep.mubr.f32.mxu0 0.0
  %217 = vmatmul.mubr.f32.gmra.mrb[0].mxu0 %v141
  %v218 = vpop.f32.mrb[0].mxu0
  %v219 = vadd.f32 %v122, %v218
  %v220 = vpop.f32.mrb[0].mxu0
  %221 = vmatprep.mubr.f32.mxu0 0.0
  %222 = vmatmul.mubr.f32.gmra.mrb[0].mxu0 %v144
  %v223 = vpop.f32.mrb[0].mxu0
  %v224 = vadd.f32 %v127, %v223
  %v225 = vpop.f32.mrb[0].mxu0
  %226 = vmatprep.mubr.f32.mxu0 0.0
  %227 = vmatmul.mubr.f32.gmra.mrb[0].mxu0 %v147
  %v228 = vpop.f32.mrb[0].mxu0
  %v229 = vadd.f32 %v132, %v228
  %v230 = vpop.f32.mrb[0].mxu0
  %231 = vmatprep.mubr.f32.mxu0 0.0
  %232 = vmatmul.mubr.f32.gmra.mrb[0].mxu0 %v150
  %v233 = vpop.f32.mrb[0].mxu0
  %v234 = vadd.f32 %v137, %v233
  %v235 = vpop.f32.mrb[0].mxu0
  %236 = vdwg.mxu0
  %v237 = vld [vmem:[%s2] sm:$0xff]
  %v238 = vld [vmem:[%s2 + $0x8] sm:$0xff]
  %v239 = vld [vmem:[%s2 + $0x10] sm:$0xff]
  %v240 = vld [vmem:[%s2 + $0x18] sm:$0xff]
  %v241 = vld [vmem:[%s5] sm:$0x1]
  %243 = vset.pattern.permute.xlu0 0
  %244 = vperm.xlu0 %243, %v237
  %v245 = vpop.permute.xlu0 %244
  %248 = vset.pattern.permute.xlu0 0
  %249 = vperm.xlu0 %248, %v238
  %v250 = vpop.permute.xlu0 %249
  %253 = vset.pattern.permute.xlu0 0
  %254 = vperm.xlu0 %253, %v239
  %v255 = vpop.permute.xlu0 %254
  %258 = vset.pattern.permute.xlu0 0
  %259 = vperm.xlu0 %258, %v240
  %v260 = vpop.permute.xlu0 %259
  %v263 = vlaneseq
  %v264 = vshrl.u32 %v263, 7
  %v265 = vsub.s32 0, %v264
  %v266 = vrot.slane %v241, %v265
  %v268 = vmul.f32 %v245, %v266
  %v269 = vmul.f32 %v250, %v266
  %v270 = vmul.f32 %v255, %v266
  %v271 = vmul.f32 %v260, %v266
  %v272 = vadd.f32 %v219, %v268
  %v273 = vadd.f32 %v224, %v269
  %v274 = vadd.f32 %v229, %v270
  %v275 = vadd.f32 %v234, %v271
  %v276 = vld [vmem:[%s6] sm:$0x1]
  %v278 = vlaneseq
  %v279 = vshrl.u32 %v278, 7
  %v280 = vsub.s32 0, %v279
  %v281 = vrot.slane %v276, %v280
  %v283 = vadd.f32 %v272, %v281
  %v284 = vadd.f32 %v273, %v281
  %v285 = vadd.f32 %v274, %v281
  %v286 = vadd.f32 %v275, %v281
  %v287 = vmax.f32 %v283, 0.0
  %v288 = vmax.f32 %v284, 0.0
  %v289 = vmax.f32 %v285, 0.0
  %v290 = vmax.f32 %v286, 0.0
  %291 = vst.msk [vmem:[%s7] sm:$0xff] %vm42, %v287
  %292 = vst.msk [vmem:[%s7 + $0x8] sm:$0xff] %vm42, %v288
  %293 = vst.msk [vmem:[%s7 + $0x10] sm:$0xff] %vm42, %v289
  %294 = vst.msk [vmem:[%s7 + $0x18] sm:$0xff] %vm42, %v290
  // Predicated region
  $region30: #{equivariant_gnn_forward.5} parent=0 // pred_check
    _
  $region31: #{equivariant_gnn_forward.5} parent=0 // pred_check_branch
    %296 = sbr.rel (0) target = $region33
  $region32: #{equivariant_gnn_forward.5} parent=0 // pred_region
    _
  $region33: #{equivariant_gnn_forward.5} parent=0 // pred_fallthru
    _
  // Predicated region
  $region34: #{equivariant_gnn_forward.5} parent=0 // pred_check
    _
  $region35: #{equivariant_gnn_forward.5} parent=0 // pred_check_branch
    %298 = sbr.rel (0) target = $region37
  $region36: #{equivariant_gnn_forward.5} parent=0 // pred_region
    _
  $region37: #{equivariant_gnn_forward.5} parent=0 // pred_fallthru
    _

// kernel: equivariant_gnn_forward.9
$region0: #{equivariant_gnn_forward.9}
  #allocation0 [shape = 'u32[]', space=smem, size = 0x4, offset = 0x4, fixed_abs, tag = 'smem constant byte address 0x4 - core index']
  #allocation1 [shape = 'u32[144,128]{1,0:T(1,128)}', space=vmem, size = 0x12000, scoped, tag = 'internal scratch']
  #allocation2 [shape = 'f32[1,1]{1,0:T(1,128)S(1)}', space=vmem, size = 0x200, scoped, tag = 'scoped memory for equivariant_gnn_forward.9']
  %s0 = inlined_call_operand.vmem [shape: f32[2,32], index: 0, kind: input, shape index: {}]
  %s1 = inlined_call_operand.vmem [shape: f32[32,32], index: 1, kind: input, shape index: {}]
  %s2 = inlined_call_operand.vmem [shape: f32[1,32], index: 2, kind: input, shape index: {}]
  %s3 = inlined_call_operand.vmem [shape: f32[32,1], index: 3, kind: input, shape index: {}]
  %s4 = inlined_call_operand.<no memory space> [shape: f32[1,1], index: 4, kind: input, shape index: {}]
  %s5 = inlined_call_operand.vmem [shape: f32[2,1], index: 5, kind: output, shape index: {}]
  %s6 = sld [smem:[#allocation0]]
  $region30: #{equivariant_gnn_forward.9} parent=0
    _
  %s8 = ssub.s32 1, %s6
  %s9 = scalar_select 0, %s8, %s6
  %v10 = vstv %s4
  %11 = vst [vmem:[#allocation2] sm:$0x1] %v10
  // Predicated region
  $region2: #{equivariant_gnn_forward.9} parent=0 // pred_check
    _
  $region3: #{equivariant_gnn_forward.9} parent=0 // pred_check_branch
    %13 = sbr.rel (0) target = $region5
  $region4: #{equivariant_gnn_forward.9} parent=0 // pred_region
    _
  $region5: #{equivariant_gnn_forward.9} parent=0 // pred_fallthru
    _
  // Predicated region
  $region6: #{equivariant_gnn_forward.9} parent=0 // pred_check
    _
  $region7: #{equivariant_gnn_forward.9} parent=0 // pred_check_branch
    %15 = sbr.rel (0) target = $region9
  $region8: #{equivariant_gnn_forward.9} parent=0 // pred_region
    _
  $region9: #{equivariant_gnn_forward.9} parent=0 // pred_fallthru
    _
  // Predicated region
  $region10: #{equivariant_gnn_forward.9} parent=0 // pred_check
    _
  $region11: #{equivariant_gnn_forward.9} parent=0 // pred_check_branch
    %17 = sbr.rel (0) target = $region13
  $region12: #{equivariant_gnn_forward.9} parent=0 // pred_region
    _
  $region13: #{equivariant_gnn_forward.9} parent=0 // pred_fallthru
    _
  // Predicated region
  $region14: #{equivariant_gnn_forward.9} parent=0 // pred_check
    _
  $region15: #{equivariant_gnn_forward.9} parent=0 // pred_check_branch
    %19 = sbr.rel (0) target = $region17
  $region16: #{equivariant_gnn_forward.9} parent=0 // pred_region
    _
  $region17: #{equivariant_gnn_forward.9} parent=0 // pred_fallthru
    _
  // Predicated region
  $region18: #{equivariant_gnn_forward.9} parent=0 // pred_check
    _
  $region19: #{equivariant_gnn_forward.9} parent=0 // pred_check_branch
    %21 = sbr.rel (0) target = $region21
  $region20: #{equivariant_gnn_forward.9} parent=0 // pred_region
    _
  $region21: #{equivariant_gnn_forward.9} parent=0 // pred_fallthru
    _
  %v22 = vld [vmem:[%s0] sm:$0x3]
  %v23 = vld [vmem:[%s1] sm:$0xff]
  %v24 = vld [vmem:[%s1 + $0x8] sm:$0xff]
  %v25 = vld [vmem:[%s1 + $0x10] sm:$0xff]
  %v26 = vld [vmem:[%s1 + $0x18] sm:$0xff]
  %v27 = vld [vmem:[%s2] sm:$0x1]
  %v29 = vlaneseq
  %v30 = vshrl.u32 %v29, 7
  %v31 = vsub.s32 0, %v30
  %v32 = vrot.slane %v27, %v31
  %vm34 = vcmask 261120
  %v36 = vsel %vm34, %v22, 0
  %38 = vmatprep.subr.mxu0 0.0
  %39 = vmatpush1.msra.mxu0 %v23
  %40 = vmatprep.subr.mxu0 0.0
  %41 = vmatpush1.msra.mxu0 %v24
  %42 = vmatprep.subr.mxu0 0.0
  %43 = vmatpush1.msra.mxu0 %v25
  %44 = vmatprep.subr.mxu0 0.0
  %45 = vmatpush1.msra.mxu0 %v26
  %46 = vmatprep.subr.mxu0 0.0
  %47 = vmatpush1.msra.mxu0 0.0
  %48 = vmatprep.subr.mxu0 0.0
  %49 = vmatpush1.msra.mxu0 0.0
  %50 = vmatprep.subr.mxu0 0.0
  %51 = vmatpush1.msra.mxu0 0.0
  %52 = vmatprep.subr.mxu0 0.0
  %53 = vmatpush1.msra.mxu0 0.0
  %54 = vmatprep.subr.mxu0 0.0
  %55 = vmatpush1.msra.mxu0 0.0
  %56 = vmatprep.subr.mxu0 0.0
  %57 = vmatpush1.msra.mxu0 0.0
  %58 = vmatprep.subr.mxu0 0.0
  %59 = vmatpush1.msra.mxu0 0.0
  %60 = vmatprep.subr.mxu0 0.0
  %61 = vmatpush1.msra.mxu0 0.0
  %62 = vmatprep.subr.mxu0 0.0
  %63 = vmatpush1.msra.mxu0 0.0
  %64 = vmatprep.subr.mxu0 0.0
  %65 = vmatpush1.msra.mxu0 0.0
  %66 = vmatprep.subr.mxu0 0.0
  %67 = vmatpush1.msra.mxu0 0.0
  %68 = vmatprep.subr.mxu0 0.0
  %69 = vmatpush1.msra.mxu0 0.0
  %70 = vmatprep.subr.mxu0 0.0
  %71 = vmatpush1.msra.mxu0 0.0
  %72 = vmatprep.subr.mxu0 0.0
  %73 = vmatpush1.msra.mxu0 0.0
  %74 = vmatprep.subr.mxu0 0.0
  %75 = vmatpush1.msra.mxu0 0.0
  %76 = vmatprep.subr.mxu0 0.0
  %77 = vmatpush1.msra.mxu0 0.0
  %78 = vmatprep.subr.mxu0 0.0
  %79 = vmatpush1.msra.mxu0 0.0
  %80 = vmatprep.subr.mxu0 0.0
  %81 = vmatpush1.msra.mxu0 0.0
  %82 = vmatprep.subr.mxu0 0.0
  %83 = vmatpush1.msra.mxu0 0.0
  %84 = vmatprep.subr.mxu0 0.0
  %85 = vmatpush1.msra.mxu0 0.0
  %86 = vmatprep.subr.mxu0 0.0
  %87 = vmatpush1.msra.mxu0 0.0
  %88 = vmatprep.subr.mxu0 0.0
  %89 = vmatpush1.msra.mxu0 0.0
  %90 = vmatprep.subr.mxu0 0.0
  %91 = vmatpush1.msra.mxu0 0.0
  %92 = vmatprep.subr.mxu0 0.0
  %93 = vmatpush1.msra.mxu0 0.0
  %94 = vmatprep.subr.mxu0 0.0
  %95 = vmatpush1.msra.mxu0 0.0
  %96 = vmatprep.subr.mxu0 0.0
  %97 = vmatpush1.msra.mxu0 0.0
  %98 = vmatprep.subr.mxu0 0.0
  %99 = vmatpush1.msra.mxu0 0.0
  %100 = vmatprep.subr.mxu0 0.0
  %101 = vmatpush1.msra.mxu0 0.0
  %102 = vmatprep.mubr.f32.mxu0 0.0
  %103 = vmatmul.mubr.f32.gmra.mrb[0].mxu0 %v36
  %v104 = vpop.f32.mrb[0].mxu0
  %v105 = vadd.f32 %v32, %v104
  %v106 = vpop.f32.mrb[0].mxu0
  %107 = vdwg.mxu0
  %v108 = vmax.f32 %v105, 0.0
  %v109 = vld [vmem:[%s3] sm:$0xff]
  %v110 = vld [vmem:[%s3 + $0x8] sm:$0xff]
  %v111 = vld [vmem:[%s3 + $0x10] sm:$0xff]
  %v112 = vld [vmem:[%s3 + $0x18] sm:$0xff]
  %v113 = vld [vmem:[#allocation2] sm:$0x1]
  %v115 = vlaneseq
  %v116 = vshrl.u32 %v115, 7
  %v117 = vsub.s32 0, %v116
  %v118 = vrot.slane %v113, %v117
  %v121 = vsel %vm34, %v108, 0
  %123 = vmatprep.subr.mxu0 0.0
  %124 = vmatpush1.msra.mxu0 %v109
  %125 = vmatprep.subr.mxu0 0.0
  %126 = vmatpush1.msra.mxu0 %v110
  %127 = vmatprep.subr.mxu0 0.0
  %128 = vmatpush1.msra.mxu0 %v111
  %129 = vmatprep.subr.mxu0 0.0
  %130 = vmatpush1.msra.mxu0 %v112
  %131 = vmatprep.subr.mxu0 0.0
  %132 = vmatpush1.msra.mxu0 0.0
  %133 = vmatprep.subr.mxu0 0.0
  %134 = vmatpush1.msra.mxu0 0.0
  %135 = vmatprep.subr.mxu0 0.0
  %136 = vmatpush1.msra.mxu0 0.0
  %137 = vmatprep.subr.mxu0 0.0
  %138 = vmatpush1.msra.mxu0 0.0
  %139 = vmatprep.subr.mxu0 0.0
  %140 = vmatpush1.msra.mxu0 0.0
  %141 = vmatprep.subr.mxu0 0.0
  %142 = vmatpush1.msra.mxu0 0.0
  %143 = vmatprep.subr.mxu0 0.0
  %144 = vmatpush1.msra.mxu0 0.0
  %145 = vmatprep.subr.mxu0 0.0
  %146 = vmatpush1.msra.mxu0 0.0
  %147 = vmatprep.subr.mxu0 0.0
  %148 = vmatpush1.msra.mxu0 0.0
  %149 = vmatprep.subr.mxu0 0.0
  %150 = vmatpush1.msra.mxu0 0.0
  %151 = vmatprep.subr.mxu0 0.0
  %152 = vmatpush1.msra.mxu0 0.0
  %153 = vmatprep.subr.mxu0 0.0
  %154 = vmatpush1.msra.mxu0 0.0
  %155 = vmatprep.subr.mxu0 0.0
  %156 = vmatpush1.msra.mxu0 0.0
  %157 = vmatprep.subr.mxu0 0.0
  %158 = vmatpush1.msra.mxu0 0.0
  %159 = vmatprep.subr.mxu0 0.0
  %160 = vmatpush1.msra.mxu0 0.0
  %161 = vmatprep.subr.mxu0 0.0
  %162 = vmatpush1.msra.mxu0 0.0
  %163 = vmatprep.subr.mxu0 0.0
  %164 = vmatpush1.msra.mxu0 0.0
  %165 = vmatprep.subr.mxu0 0.0
  %166 = vmatpush1.msra.mxu0 0.0
  %167 = vmatprep.subr.mxu0 0.0
  %168 = vmatpush1.msra.mxu0 0.0
  %169 = vmatprep.subr.mxu0 0.0
  %170 = vmatpush1.msra.mxu0 0.0
  %171 = vmatprep.subr.mxu0 0.0
  %172 = vmatpush1.msra.mxu0 0.0
  %173 = vmatprep.subr.mxu0 0.0
  %174 = vmatpush1.msra.mxu0 0.0
  %175 = vmatprep.subr.mxu0 0.0
  %176 = vmatpush1.msra.mxu0 0.0
  %177 = vmatprep.subr.mxu0 0.0
  %178 = vmatpush1.msra.mxu0 0.0
  %179 = vmatprep.subr.mxu0 0.0
  %180 = vmatpush1.msra.mxu0 0.0
  %181 = vmatprep.subr.mxu0 0.0
  %182 = vmatpush1.msra.mxu0 0.0
  %183 = vmatprep.subr.mxu0 0.0
  %184 = vmatpush1.msra.mxu0 0.0
  %185 = vmatprep.subr.mxu0 0.0
  %186 = vmatpush1.msra.mxu0 0.0
  %187 = vmatprep.mubr.f32.mxu0 0.0
  %188 = vmatmul.mubr.f32.gmra.mrb[0].mxu0 %v121
  %v189 = vpop.f32.mrb[0].mxu0
  %v190 = vadd.f32 %v118, %v189
  %v191 = vpop.f32.mrb[0].mxu0
  %192 = vdwg.mxu0
  %vm193 = vcmask 1024
  %194 = vst.msk [vmem:[%s5] sm:$0x3] %vm193, %v190
  // Predicated region
  $region22: #{equivariant_gnn_forward.9} parent=0 // pred_check
    _
  $region23: #{equivariant_gnn_forward.9} parent=0 // pred_check_branch
    %196 = sbr.rel (0) target = $region25
  $region24: #{equivariant_gnn_forward.9} parent=0 // pred_region
    _
  $region25: #{equivariant_gnn_forward.9} parent=0 // pred_fallthru
    _
  // Predicated region
  $region26: #{equivariant_gnn_forward.9} parent=0 // pred_check
    _
  $region27: #{equivariant_gnn_forward.9} parent=0 // pred_check_branch
    %198 = sbr.rel (0) target = $region29
  $region28: #{equivariant_gnn_forward.9} parent=0 // pred_region
    _
  $region29: #{equivariant_gnn_forward.9} parent=0 // pred_fallthru
    _

</llo_original>
